<compile_context>
chip_gen: v7x
topology: tpu7x:2x2x1
jax: 0.10.0
libtpu: 0.0.40
codegen_flags: <defaults>
</compile_context>

<pallas_src>
import math
from typing import NamedTuple, Optional, Tuple

import jax
import jax.numpy as jnp
from jax.experimental import pallas as pl
from jax.experimental.pallas import tpu as pltpu


# ----------------------------------------------------------------------------
# Helpers
# ----------------------------------------------------------------------------
def _round_up(x: int, m: int) -> int:
    return ((x + m - 1) // m) * m


def _vmem_capacity_bytes() -> int:
    """Generation-aware VMEM capacity; falls back to v7x's 64 MiB if unknown."""
    try:
        info = pltpu.get_tpu_info()
        cap = getattr(info, "vmem_capacity_bytes", None)
        if cap:
            return int(cap)
    except Exception:
        pass
    return 64 * 1024 * 1024


def _choose_tiles(k: int, n_128: int, w_itemsize: int,
                  stream_budget: int) -> Tuple[int, int]:
    """Pick (tk, tn) so the double-buffered weight tile fits `stream_budget`.

    Prefers full-K (single reduction step) when it fits; otherwise K-tiles so the
    kernel still compiles for very large fc1_in_dim (v7x's 64 MiB VMEM binds first).
    N tiles are lane-dense multiples of 128 and capped near N/2 so a >=2-step grid
    exists for v7x's two TensorCores.
    """
    tn_cap_2steps = max(128, ((n_128 // 2) // 128) * 128) if n_128 >= 256 else 128

    # Full-K: how wide can the N tile be with 2x (double-buffered) weight tiles?
    tn_full_k = (stream_budget // max(1, 2 * k * w_itemsize) // 128) * 128
    if tn_full_k >= 128:
        tn = min(n_128, tn_full_k, 8192, tn_cap_2steps)
        return k, tn

    # K too large for even a 128-lane full-K tile: tile the reduction axis.
    tn = min(256, n_128, tn_cap_2steps)
    tk = (stream_budget // max(1, 2 * tn * w_itemsize) // 128) * 128
    tk = max(128, tk)
    tk = min(tk, _round_up(k, 128))
    return tk, tn


# ----------------------------------------------------------------------------
# Kernel
# ----------------------------------------------------------------------------
def _mlp_decoder_fc1_kernel(x_ref, w_ref, b_ref, o_ref, acc_ref):
    # x_ref:   (M, tk)   VMEM f32
    # w_ref:   (tk, tn)  VMEM f32 / bf16 / fp8 (streamed dtype)
    # b_ref:   (1, tn)   VMEM f32
    # o_ref:   (M, tn)   VMEM f32
    # acc_ref: (M, tn)   VMEM f32 scratch (resident across the K axis)
    k = pl.program_id(1)

    @pl.when(k == 0)
    def _init():
        acc_ref[...] = jnp.zeros_like(acc_ref)

    x = x_ref[...]
    w = w_ref[...]
    if w.dtype != jnp.float32:
        # Stream weights in low precision, feed the MXU in that precision,
        # accumulate in f32.
        x = x.astype(w.dtype)
    acc_ref[...] += jnp.dot(x, w, preferred_element_type=jnp.float32)

    @pl.when(k == pl.num_programs(1) - 1)
    def _epilogue():
        y = acc_ref[...] + b_ref[...]
        o_ref[...] = jnp.maximum(y, 0.0).astype(o_ref.dtype)


# ----------------------------------------------------------------------------
# Parameter preparation (one-time, at load) + forward
# ----------------------------------------------------------------------------
_PALLAS_MIN_WEIGHT_BYTES = 1 << 20  # below ~1 MiB, pallas launch overhead dominates


class MLPDecoderParams(NamedTuple):
    weight: jax.Array          # pallas: (k_pad, n_pad) cast+padded; dense: (K, N)
    bias: jax.Array            # pallas: (1, n_pad) f32;             dense: (N,) f32
    fc1_in_dim: int
    fc1_out_dim: int
    sqrt_fc1_out_dim: int
    use_pallas: bool
    tk: int
    tn: int
    k_pad: int
    n_pad: int
    vmem_limit_bytes: int


def prepare_mlp_decoder_params(weight_t: jax.Array, bias: jax.Array,
                               sqrt_fc1_out_dim: int, *,
                               weight_dtype=None,
                               force_pallas: Optional[bool] = None,
                               tile_override: Optional[Tuple[int, int]] = None
                               ) -> MLPDecoderParams:
    """One-time weight prep: dtype cast, padding, and tile selection.

    weight_t: (fc1_in_dim, fc1_out_dim) -- transposed torch Linear weight.
    weight_dtype: optional streaming dtype (e.g. jnp.bfloat16, or fp8 on v7x).
    """
    fc1_in_dim, fc1_out_dim = weight_t.shape
    assert fc1_out_dim == sqrt_fc1_out_dim ** 2
    assert bias.shape == (fc1_out_dim,)

    w_dtype = jnp.float32 if weight_dtype is None else jnp.dtype(weight_dtype)
    w_itemsize = jnp.dtype(w_dtype).itemsize
    weight_bytes = fc1_in_dim * fc1_out_dim * w_itemsize

    use_pallas = (weight_bytes >= _PALLAS_MIN_WEIGHT_BYTES
                  if force_pallas is None else bool(force_pallas))

    if not use_pallas:
        # Tiny decoder: let XLA fuse a plain dot; no padding/casting churn.
        return MLPDecoderParams(
            weight=weight_t.astype(w_dtype), bias=bias.astype(jnp.float32),
            fc1_in_dim=fc1_in_dim, fc1_out_dim=fc1_out_dim,
            sqrt_fc1_out_dim=sqrt_fc1_out_dim, use_pallas=False,
            tk=fc1_in_dim, tn=fc1_out_dim, k_pad=fc1_in_dim, n_pad=fc1_out_dim,
            vmem_limit_bytes=0)

    vmem_cap = _vmem_capacity_bytes()
    vmem_limit = min(vmem_cap * 3 // 4, 96 * 1024 * 1024)   # 48 MiB v7x, 96 MiB v5e/v6e
    stream_budget = vmem_limit // 2                         # 2x-buffered weight stream

    n_128 = _round_up(fc1_out_dim, 128)
    if tile_override is not None:
        tk, tn = tile_override
    else:
        tk, tn = _choose_tiles(fc1_in_dim, n_128, w_itemsize, stream_budget)

    k_pad = _round_up(fc1_in_dim, tk)
    n_pad = _round_up(n_128, tn)

    # One-time cast + pad (NOT on the per-call forward path).
    w = weight_t.astype(w_dtype)
    if (k_pad, n_pad) != (fc1_in_dim, fc1_out_dim):
        w = jnp.pad(w, ((0, k_pad - fc1_in_dim), (0, n_pad - fc1_out_dim)))
    b = bias.astype(jnp.float32).reshape(1, fc1_out_dim)
    if n_pad != fc1_out_dim:
        b = jnp.pad(b, ((0, 0), (0, n_pad - fc1_out_dim)))

    return MLPDecoderParams(
        weight=w, bias=b, fc1_in_dim=fc1_in_dim, fc1_out_dim=fc1_out_dim,
        sqrt_fc1_out_dim=sqrt_fc1_out_dim, use_pallas=True,
        tk=tk, tn=tn, k_pad=k_pad, n_pad=n_pad, vmem_limit_bytes=vmem_limit)


def _fc1_relu_pallas(params: MLPDecoderParams, x2d: jax.Array) -> jax.Array:
    m = x2d.shape[0]
    tk, tn, k_pad, n_pad = params.tk, params.tn, params.k_pad, params.n_pad
    if x2d.shape[1] != k_pad:
        x2d = jnp.pad(x2d, ((0, 0), (0, k_pad - x2d.shape[1])))  # K floats -- negligible

    grid = (n_pad // tn, k_pad // tk)  # reduction axis last
    w_itemsize = jnp.dtype(params.weight.dtype).itemsize
    cost = pl.CostEstimate(
        flops=2 * m * k_pad * n_pad,
        transcendentals=0,
        bytes_accessed=(k_pad * n_pad * w_itemsize      # weight stream
                        + m * k_pad * 4                 # activations
                        + n_pad * 4                     # bias
                        + m * n_pad * 4),               # output
    )

    out = pl.pallas_call(
        _mlp_decoder_fc1_kernel,
        out_shape=jax.ShapeDtypeStruct((m, n_pad), jnp.float32),
        grid=grid,
        in_specs=[
            pl.BlockSpec((m, tk), lambda j, k: (0, k)),   # activations (reused across N)
            pl.BlockSpec((tk, tn), lambda j, k: (k, j)),  # streamed weight tile
            pl.BlockSpec((1, tn), lambda j, k: (0, j)),   # bias tile
        ],
        out_specs=pl.BlockSpec((m, tn), lambda j, k: (0, j)),
        scratch_shapes=[pltpu.VMEM((m, tn), jnp.float32)],
        compiler_params=pltpu.CompilerParams(
            dimension_semantics=("parallel", "arbitrary"),  # N across TCs, K reduction
            vmem_limit_bytes=params.vmem_limit_bytes,
        ),
        cost_estimate=cost,
    )(x2d, params.weight, params.bias)
    return out[:, :params.fc1_out_dim]


def _fc1_relu_dense(params: MLPDecoderParams, x2d: jax.Array) -> jax.Array:
    w = params.weight
    x = x2d.astype(w.dtype) if w.dtype != jnp.float32 else x2d
    y = jnp.dot(x, w, preferred_element_type=jnp.float32) + params.bias.reshape(1, -1)
    return jnp.maximum(y, 0.0)


def mlp_decoder_forward(params: MLPDecoderParams, enc_output: jax.Array,
                        has_sigmoid: bool = False) -> jax.Array:
    """Pallas equivalent of MLPDecoder.forward (drop_p=0.0; has_sigmoid unused)."""
    x2d = enc_output.reshape(1, params.fc1_in_dim).astype(jnp.float32)
    fc1 = (_fc1_relu_pallas(params, x2d) if params.use_pallas
           else _fc1_relu_dense(params, x2d))
    return fc1.reshape(params.sqrt_fc1_out_dim, -1)


def mlp_decoder_forward_batched(params: MLPDecoderParams,
                                enc_outputs: jax.Array) -> jax.Array:
    """(B, fc1_in_dim) -> (B, sqrt, sqrt): amortizes the weight stream over B rows."""
    x2d = enc_outputs.reshape(-1, params.fc1_in_dim).astype(jnp.float32)
    fc1 = (_fc1_relu_pallas(params, x2d) if params.use_pallas
           else _fc1_relu_dense(params, x2d))
    return fc1.reshape(-1, params.sqrt_fc1_out_dim, params.sqrt_fc1_out_dim)


# ----------------------------------------------------------------------------
# Self-test
# ----------------------------------------------------------------------------
def _reference(x, w, b):
    y = jnp.dot(x, w, precision=jax.lax.Precision.HIGHEST) + b
    return jnp.maximum(y, 0.0)


if __name__ == "__main__":
    key = jax.random.PRNGKey(0)
    k1, k2, k3, k4, k5, k6, k7 = jax.random.split(key, 7)

    # ---- Case A: module-default small shape (fc1_in_dim=32, sqrt=16 -> 256) ----
    fc1_in_dim = 32
    sqrt_out = 16
    fc1_out_dim = sqrt_out ** 2
    bound = 1.0 / math.sqrt(fc1_in_dim)
    weight_t = jax.random.uniform(k1, (fc1_in_dim, fc1_out_dim),
                                  minval=-bound, maxval=bound, dtype=jnp.float32)
    bias = jax.random.uniform(k2, (fc1_out_dim,),
                              minval=-bound, maxval=bound, dtype=jnp.float32)
    enc_output = jax.random.normal(k3, (fc1_in_dim,), dtype=jnp.float32)
    ref_a = _reference(enc_output.reshape(1, -1), weight_t,
                       bias.reshape(1, -1)).reshape(sqrt_out, -1)

    # A1: forced Pallas path, exact f32 weights (grid (2,1), 128-wide lane-dense tiles).
    params_a = prepare_mlp_decoder_params(weight_t, bias, sqrt_out, force_pallas=True)
    out_a = jax.block_until_ready(mlp_decoder_forward(params_a, enc_output))
    assert out_a.shape == (sqrt_out, sqrt_out)
    assert jnp.allclose(out_a, ref_a, atol=1e-4, rtol=1e-4)

    # A2: auto-dispatch short-circuits the tiny decoder to a plain fused dot.
    params_auto = prepare_mlp_decoder_params(weight_t, bias, sqrt_out)
    assert not params_auto.use_pallas
    out_auto = jax.block_until_ready(mlp_decoder_forward(params_auto, enc_output))
    assert jnp.allclose(out_auto, ref_a, atol=1e-4, rtol=1e-4)

    # ---- Case B: fc1_in_dim=256, sqrt=20 -> 400 (exercises N padding + K tiling) ----
    fc1_in_dim2 = 256
    sqrt_out2 = 20
    fc1_out_dim2 = sqrt_out2 ** 2
    bound2 = 1.0 / math.sqrt(fc1_in_dim2)
    weight_t2 = jax.random.uniform(k4, (fc1_in_dim2, fc1_out_dim2),
                                   minval=-bound2, maxval=bound2, dtype=jnp.float32)
    bias2 = jax.random.uniform(k5, (fc1_out_dim2,),
                               minval=-bound2, maxval=bound2, dtype=jnp.float32)
    enc_output2 = jax.random.normal(k6, (fc1_in_dim2,), dtype=jnp.float32)
    ref_b = _reference(enc_output2.reshape(1, -1), weight_t2,
                       bias2.reshape(1, -1)).reshape(sqrt_out2, -1)

    # B1: K-tiled accumulator path (tile_override forces a (2, 2) grid with pl.when epilogue).
    params_b = prepare_mlp_decoder_params(weight_t2, bias2, sqrt_out2,
                                          force_pallas=True, tile_override=(128, 256))
    out_b = jax.block_until_ready(mlp_decoder_forward(params_b, enc_output2))
    assert out_b.shape == (sqrt_out2, sqrt_out2)
    assert jnp.allclose(out_b, ref_b, atol=1e-4, rtol=1e-4)

    # B2: bf16 weight stream (cast once at prepare time), f32 MXU accumulation.
    params_bf16 = prepare_mlp_decoder_params(weight_t2, bias2, sqrt_out2,
                                             weight_dtype=jnp.bfloat16,
                                             force_pallas=True)
    out_bf16 = jax.block_until_ready(mlp_decoder_forward(params_bf16, enc_output2))
    assert jnp.allclose(out_bf16, ref_b, atol=3e-2, rtol=3e-2)

    # B3: batched forward amortizes the weight stream over B rows.
    enc_batch = jax.random.normal(k7, (4, fc1_in_dim2), dtype=jnp.float32)
    out_batch = jax.block_until_ready(mlp_decoder_forward_batched(params_b, enc_batch))
    ref_batch = _reference(enc_batch, weight_t2, bias2.reshape(1, -1)
                           ).reshape(4, sqrt_out2, sqrt_out2)
    assert out_batch.shape == (4, sqrt_out2, sqrt_out2)
    assert jnp.allclose(out_batch, ref_batch, atol=1e-4, rtol=1e-4)

    print("KERNEL_OK")
</pallas_src>

<mosaic_0001>
module attributes {stable_mosaic.version = 11 : i64} {
  func.func @_mlp_decoder_fc1_kernel(%arg0: i32, %arg1: i32, %arg2: memref<1x32xf32, #tpu.memory_space<vmem>>, %arg3: memref<32x128xf32, #tpu.memory_space<vmem>>, %arg4: memref<1x128xf32, #tpu.memory_space<vmem>>, %arg5: memref<1x128xf32, #tpu.memory_space<vmem>>, %arg6: memref<1x128xf32, #tpu.memory_space<vmem>>) attributes {dimension_semantics = [#tpu.dimension_semantics<parallel>, #tpu.dimension_semantics<arbitrary>], iteration_bounds = array<i64: 2, 1>, scalar_prefetch = 0 : i64, scratch_operands = 1 : i64, tpu.core_type = #tpu.core_type<tc>, window_params = [{transform_indices = @transform_0, window_bounds = array<i64: 1, 32>}, {transform_indices = @transform_1, window_bounds = array<i64: 32, 128>}, {transform_indices = @transform_2, window_bounds = array<i64: 1, 128>}, {transform_indices = @transform_3, window_bounds = array<i64: 1, 128>}]} {
    %c0_i32 = arith.constant 0 : i32
    %0 = arith.cmpi eq, %arg1, %c0_i32 : i32
    %1 = arith.extui %0 : i1 to i32
    %c0_i32_0 = arith.constant 0 : i32
    %2 = arith.cmpi ne, %1, %c0_i32_0 : i32
    scf.if %2 {
      %cst_10 = arith.constant 0.000000e+00 : f32
      %12 = vector.broadcast %cst_10 : f32 to vector<1x128xf32>
      %c0_11 = arith.constant 0 : index
      %c0_12 = arith.constant 0 : index
      %13 = vector.load %arg6[%c0_11, %c0_12] : memref<1x128xf32, #tpu.memory_space<vmem>>, vector<1x128xf32>
      tpu.vector_store %arg6[%c0_11, %c0_12], %12 {strides = array<i32>} : memref<1x128xf32, #tpu.memory_space<vmem>>, vector<1x128xf32>,
    } else {
    }
    %c0 = arith.constant 0 : index
    %c0_1 = arith.constant 0 : index
    %3 = vector.load %arg2[%c0, %c0_1] : memref<1x32xf32, #tpu.memory_space<vmem>>, vector<1x32xf32>
    %c0_2 = arith.constant 0 : index
    %c0_3 = arith.constant 0 : index
    %4 = vector.load %arg3[%c0_2, %c0_3] : memref<32x128xf32, #tpu.memory_space<vmem>>, vector<32x128xf32>
    %c0_4 = arith.constant 0 : index
    %c0_5 = arith.constant 0 : index
    %5 = vector.load %arg6[%c0_4, %c0_5] : memref<1x128xf32, #tpu.memory_space<vmem>>, vector<1x128xf32>
    %cst = arith.constant dense<0.000000e+00> : vector<1x128xf32>
    %6 = tpu.matmul %3, %4, %cst {dimension_numbers = #tpu.dot_dimension_numbers<[1], [0], [0], [1], [0, 0, 1, 1], [], []>} : vector<1x32xf32>, vector<32x128xf32>, vector<1x128xf32> -> vector<1x128xf32>
    %7 = arith.addf %5, %6 : vector<1x128xf32>
    %c0_6 = arith.constant 0 : index
    %c0_7 = arith.constant 0 : index
    %8 = vector.load %arg6[%c0_6, %c0_7] : memref<1x128xf32, #tpu.memory_space<vmem>>, vector<1x128xf32>
    tpu.vector_store %arg6[%c0_6, %c0_7], %7 {strides = array<i32>} : memref<1x128xf32, #tpu.memory_space<vmem>>, vector<1x128xf32>,
    %c0_i32_8 = arith.constant 0 : i32
    %9 = arith.cmpi eq, %arg1, %c0_i32_8 : i32
    %10 = arith.extui %9 : i1 to i32
    %c0_i32_9 = arith.constant 0 : i32
    %11 = arith.cmpi ne, %10, %c0_i32_9 : i32
    scf.if %11 {
      %c0_10 = arith.constant 0 : index
      %c0_11 = arith.constant 0 : index
      %12 = vector.load %arg6[%c0_10, %c0_11] : memref<1x128xf32, #tpu.memory_space<vmem>>, vector<1x128xf32>
      %c0_12 = arith.constant 0 : index
      %c0_13 = arith.constant 0 : index
      %13 = vector.load %arg4[%c0_12, %c0_13] : memref<1x128xf32, #tpu.memory_space<vmem>>, vector<1x128xf32>
      %14 = arith.addf %12, %13 : vector<1x128xf32>
      %cst_14 = arith.constant 0.000000e+00 : f32
      %15 = vector.broadcast %cst_14 : f32 to vector<1x128xf32>
      %16 = arith.maximumf %14, %15 : vector<1x128xf32>
      %c0_15 = arith.constant 0 : index
      %c0_16 = arith.constant 0 : index
      %17 = vector.load %arg5[%c0_15, %c0_16] : memref<1x128xf32, #tpu.memory_space<vmem>>, vector<1x128xf32>
      tpu.vector_store %arg5[%c0_15, %c0_16], %16 {strides = array<i32>} : memref<1x128xf32, #tpu.memory_space<vmem>>, vector<1x128xf32>,
    } else {
    }
    return
  }
  func.func @transform_0(%arg0: i32, %arg1: i32) -> (i32, i32) {
    %c0_i32 = arith.constant 0 : i32
    %c0_i32_0 = arith.constant 0 : i32
    return %c0_i32, %arg1 : i32, i32
  }
  func.func @transform_1(%arg0: i32, %arg1: i32) -> (i32, i32) {
    %c0_i32 = arith.constant 0 : i32
    return %arg1, %arg0 : i32, i32
  }
  func.func @transform_2(%arg0: i32, %arg1: i32) -> (i32, i32) {
    %c0_i32 = arith.constant 0 : i32
    %c0_i32_0 = arith.constant 0 : i32
    return %c0_i32, %arg0 : i32, i32
  }
  func.func @transform_3(%arg0: i32, %arg1: i32) -> (i32, i32) {
    %c0_i32 = arith.constant 0 : i32
    %c0_i32_0 = arith.constant 0 : i32
    return %c0_i32, %arg0 : i32, i32
  }
}

</mosaic_0001>

<llo_original>
// kernel: tpu_custom_call.1
$region0: #{tpu_custom_call.1}
  #allocation0 [shape = 'u32[]', space=smem, size = 0x4, offset = 0x4, fixed_abs, tag = 'smem constant byte address 0x4 - core index']
  #allocation1 [shape = 'u32[144,128]{1,0:T(1,128)}', space=vmem, size = 0x12000, scoped, tag = 'internal scratch']
  #allocation2 [shape = 'f32[1,128]{1,0:T(1,128)}', space=vmem, size = 0x200, scoped, tag = 'scratch operand']
  %s0 = inlined_call_operand.hbm [shape: f32[1,32], index: 0, kind: input, shape index: {}]
  %s1 = inlined_call_operand.hbm [shape: f32[32,256], index: 1, kind: input, shape index: {}]
  %s2 = inlined_call_operand.vmem [shape: f32[1,256], index: 2, kind: input, shape index: {}]
  %s3 = inlined_call_operand.hbm [shape: f32[1,256], index: 3, kind: output, shape index: {}]
  %s4 = sld [smem:[#allocation0]]
  $region61: #{tpu_custom_call.1} parent=0
    _
  %s6 = ssub.s32 1, %s4
  %s7 = scalar_select 0, %s6, %s4
  $region1: #{tpu_custom_call.1} parent=0
    #allocation3 [shape = 'u8[512]{0}', space=vmem, size = 0x400, scoped, tag = 'input window, operand 0, single buffered']
    #allocation4 [shape = 's32[2]{0}', space=sflag, size = 0x8, scoped, tag = 'scoped memory for tpu_custom_call.1']
    #allocation5 [shape = 's32[2]{0}', space=sflag, size = 0x8, scoped, tag = 'scoped memory for tpu_custom_call.1']
    #allocation6 [shape = 'u8[32768]{0}', space=vmem, size = 0x8000, scoped, tag = 'input window, operand 1']
    #allocation7 [shape = 's32[2]{0}', space=sflag, size = 0x8, scoped, tag = 'scoped memory for tpu_custom_call.1']
    #allocation8 [shape = 'u8[1024]{0}', space=vmem, size = 0x400, scoped, tag = 'output window, operand 0']
    %8 = vsyncpa [#allocation4], 0
    %9 = vsyncpa [#allocation7], 0
    %s10 = scalar_lea.sflag [#allocation7], 1
    %11 = vsyncpa %s10, 0
    %12 = vsyncpa [#allocation5], 0
    %s13 = scalar_lea.sflag [#allocation5], 1
    %14 = vsyncpa %s13, 0
    loop: start=0, step=1, limit=4
    $region2: #{tpu_custom_call.1} parent=1 // loop_pre_header
      _
    $region3: #{tpu_custom_call.1} parent=1 // loop_header
      %s16 = sphi 0, %s20
      %p17 = scmp.ge.s32.totalorder %s16, 4
      %s23 = sphi 0, %s35
      %s24 = sphi 0, %s31
      %s25 = sphi 0, %s23
      %s26 = sphi 0, %s24
      %s27 = sphi 0, %s25
      %s28 = sphi 0, %s26
      %s38 = sphi 0, %s40
      %s41 = sphi 0, %s38
      %s42 = sphi 0, %s41
      %s58 = sphi 0, %s42
      %s66 = sphi 0, %s68
      %s69 = sphi 0, %s66
      %s70 = sphi 0, %s69
      %s86 = sphi 0, %s70
      %s92 = sphi 0, %s94
      %s95 = sphi 0, %s92
      %s96 = sphi 0, %s95
      %s112 = sphi 0, %s96
      %s118 = sphi 0, %s120
      %s121 = sphi 0, %s118
      %s122 = sphi 0, %s121
      %s138 = sphi 0, %s122
    $region4: #{tpu_custom_call.1} parent=1 // loop_header_branch
      %19 = sbr.rel (%p17) target = $region8
    $region5: #{tpu_custom_call.1} parent=1 // loop_body
      %s21 = ssub.s32 %s16, 1
      %s22 = ssub.s32 %s16, 2
      %s29 = sadd.s32 1, %s24
      %p30 = scmp.ge.s32.totalorder %s29, 1
      %s31 = scalar_select %p30, 0, %s29
      %s32 = sadd.s32 1, %s23
      %s33 = scalar_select %p30, %s32, %s23
      %p34 = scmp.ge.s32.totalorder %s33, 2
      %s35 = scalar_select %p34, 0, %s33
      %s36 = ssub.s32 %s24, %s31
      %p37 = scmp.eq.s32.totalorder %s36, 0
      %s39 = sadd.s32 %s38, 1
      %s40 = scalar_select %p37, %s38, %s39
      %p43 = pneg %p37
      %p44 = scmp.eq.s32.totalorder %s16, 1
      %p45 = por %p43, %p44
      %p46 = scmp.ne.s32.totalorder %s38, %s41
      %p47 = scmp.eq.s32.totalorder %s16, 0
      %p48 = por %p46, %p47
      %p49 = scmp.ne.s32.totalorder %s38, %s41
      %p50 = scmp.eq.s32.totalorder %s21, 1
      %p51 = por %p49, %p50
      %p52 = scmp.ne.s32.totalorder %s41, %s42
      %p53 = scmp.eq.s32.totalorder %s21, 0
      %p54 = por %p52, %p53
      %p55 = scmp.ne.s32.totalorder %s41, %s42
      %p56 = scmp.eq.s32.totalorder %s22, 1
      %p57 = por %p55, %p56
      %p59 = scmp.ne.s32.totalorder %s42, %s58
      %p60 = scmp.eq.s32.totalorder %s22, 0
      %p61 = por %p59, %p60
      %s62 = ssub.s32 %s24, %s31
      %s63 = ssub.s32 %s23, %s35
      %s64 = sor.u32 %s62, %s63
      %p65 = scmp.eq.s32.totalorder %s64, 0
      %s67 = sadd.s32 %s66, 1
      %s68 = scalar_select %p65, %s66, %s67
      %p71 = pneg %p65
      %p72 = scmp.eq.s32.totalorder %s16, 1
      %p73 = por %p71, %p72
      %p74 = scmp.ne.s32.totalorder %s66, %s69
      %p75 = scmp.eq.s32.totalorder %s16, 0
      %p76 = por %p74, %p75
      %p77 = scmp.ne.s32.totalorder %s66, %s69
      %p78 = scmp.eq.s32.totalorder %s21, 1
      %p79 = por %p77, %p78
      %p80 = scmp.ne.s32.totalorder %s69, %s70
      %p81 = scmp.eq.s32.totalorder %s21, 0
      %p82 = por %p80, %p81
      %p83 = scmp.ne.s32.totalorder %s69, %s70
      %p84 = scmp.eq.s32.totalorder %s22, 1
      %p85 = por %p83, %p84
      %p87 = scmp.ne.s32.totalorder %s70, %s86
      %p88 = scmp.eq.s32.totalorder %s22, 0
      %p89 = por %p87, %p88
      %s90 = ssub.s32 %s23, %s35
      %p91 = scmp.eq.s32.totalorder %s90, 0
      %s93 = sadd.s32 %s92, 1
      %s94 = scalar_select %p91, %s92, %s93
      %p97 = pneg %p91
      %p98 = scmp.eq.s32.totalorder %s16, 1
      %p99 = por %p97, %p98
      %p100 = scmp.ne.s32.totalorder %s92, %s95
      %p101 = scmp.eq.s32.totalorder %s16, 0
      %p102 = por %p100, %p101
      %p103 = scmp.ne.s32.totalorder %s92, %s95
      %p104 = scmp.eq.s32.totalorder %s21, 1
      %p105 = por %p103, %p104
      %p106 = scmp.ne.s32.totalorder %s95, %s96
      %p107 = scmp.eq.s32.totalorder %s21, 0
      %p108 = por %p106, %p107
      %p109 = scmp.ne.s32.totalorder %s95, %s96
      %p110 = scmp.eq.s32.totalorder %s22, 1
      %p111 = por %p109, %p110
      %p113 = scmp.ne.s32.totalorder %s96, %s112
      %p114 = scmp.eq.s32.totalorder %s22, 0
      %p115 = por %p113, %p114
      %s116 = ssub.s32 %s23, %s35
      %p117 = scmp.eq.s32.totalorder %s116, 0
      %s119 = sadd.s32 %s118, 1
      %s120 = scalar_select %p117, %s118, %s119
      %p123 = pneg %p117
      %p124 = scmp.eq.s32.totalorder %s16, 1
      %p125 = por %p123, %p124
      %p126 = scmp.ne.s32.totalorder %s118, %s121
      %p127 = scmp.eq.s32.totalorder %s16, 0
      %p128 = por %p126, %p127
      %p129 = scmp.ne.s32.totalorder %s118, %s121
      %p130 = scmp.eq.s32.totalorder %s21, 1
      %p131 = por %p129, %p130
      %p132 = scmp.ne.s32.totalorder %s121, %s122
      %p133 = scmp.eq.s32.totalorder %s21, 0
      %p134 = por %p132, %p133
      %p135 = scmp.ne.s32.totalorder %s121, %s122
      %p136 = scmp.eq.s32.totalorder %s22, 1
      %p137 = por %p135, %p136
      %p139 = scmp.ne.s32.totalorder %s122, %s138
      %p140 = scmp.eq.s32.totalorder %s22, 0
      %p141 = por %p139, %p140
      %p142 = scmp.le.s32.totalorder 1, %s16
      %p143 = scmp.lt.s32.totalorder %s16, 3
      %p144 = pnand %p142, %p143
      %p145 = pneg %p144
      // Predicated region
      $region9: #{tpu_custom_call.1} parent=5 // pred_check
        _
      $region10: #{tpu_custom_call.1} parent=5 // pred_check_branch
        %147 = sbr.rel (%p144) target = $region12
      $region11: #{tpu_custom_call.1} parent=5 // pred_region
        %s148 = ssub.s32 %s16, 1
        // Predicated region
        $region13: #{tpu_custom_call.1} parent=11 // pred_check
          %p149 = pneg %p54
        $region14: #{tpu_custom_call.1} parent=11 // pred_check_branch
          %151 = sbr.rel (%p149) target = $region16
        $region15: #{tpu_custom_call.1} parent=11 // pred_region
          %s153 = ssub.s32 16, 16
          %154 = vsyncadd [#allocation4], %s153
          %s155 = smul.addr %s26, 16
          %s156 = scalar_lea.hbm %s0, %s155
          %s158 = sshll.u32 [#allocation3], 4
          %s159 = int_to_ptr.vmem [resolvable:$true] %s158
          %161 = dma.hbm_to_vmem [thread:$0]  %s156, 16, %s159, [#allocation4]
        $region16: #{tpu_custom_call.1} parent=11 // pred_fallthru
          _
      $region12: #{tpu_custom_call.1} parent=5 // pred_fallthru
        _
      %p162 = scmp.lt.s32.totalorder %s16, 2
      // Predicated region
      $region17: #{tpu_custom_call.1} parent=5 // pred_check
        %p163 = pneg %p162
      $region18: #{tpu_custom_call.1} parent=5 // pred_check_branch
        %165 = sbr.rel (%p163) target = $region20
      $region19: #{tpu_custom_call.1} parent=5 // pred_region
        // Predicated region
        $region21: #{tpu_custom_call.1} parent=19 // pred_check
          %p166 = pneg %p76
        $region22: #{tpu_custom_call.1} parent=19 // pred_check_branch
          %168 = sbr.rel (%p166) target = $region24
        $region23: #{tpu_custom_call.1} parent=19 // pred_region
          %s169 = sand.u32 %s66, 1
          %s170 = scalar_lea.sflag [#allocation7], %s169
          %s171 = sand.u32 %s66, 1
          %s172 = smul.addr %s171, 32
          %s173 = scalar_lea.vmem [#allocation6], %s172
          %s174 = smul.u32 4, %s24
          %s176 = ssub.s32 512, 512
          %177 = vsyncadd %s170, %s176
          %s178 = smul.addr %s174, 2
          %s179 = sadd.s32 %s23, %s178
          %s180 = smul.addr %s179, 128
          %s181 = scalar_lea.hbm %s1, %s180
          %s182 = sshll.u32 %s173, 4
          %s183 = int_to_ptr.vmem [resolvable:$true] %s182
          %188 = dma.hbm_to_vmem [thread:$0]  %s181, 512, %s183, %s170, 256, 128, 8
        $region24: #{tpu_custom_call.1} parent=19 // pred_fallthru
          _
        // Predicated region
        $region25: #{tpu_custom_call.1} parent=19 // pred_check
          %p189 = pneg %p102
        $region26: #{tpu_custom_call.1} parent=19 // pred_check_branch
          %191 = sbr.rel (%p189) target = $region28
        $region27: #{tpu_custom_call.1} parent=19 // pred_region
          %p192 = scmp.lt.s32.totalorder %s23, 1
          %s193 = scalar_select %p192, %s23, 1
          %s194 = scalar_lea.vmem %s2, %s193
        $region28: #{tpu_custom_call.1} parent=19 // pred_fallthru
          _
      $region20: #{tpu_custom_call.1} parent=5 // pred_fallthru
        _
      %p195 = scmp.le.s32.totalorder 1, %s16
      %p196 = scmp.lt.s32.totalorder %s16, 3
      %p197 = pnand %p195, %p196
      %p198 = pneg %p197
      // Predicated region
      $region29: #{tpu_custom_call.1} parent=5 // pred_check
        _
      $region30: #{tpu_custom_call.1} parent=5 // pred_check_branch
        %200 = sbr.rel (%p197) target = $region32
      $region31: #{tpu_custom_call.1} parent=5 // pred_region
        %s201 = ssub.s32 %s16, 1
        // Predicated region
        $region33: #{tpu_custom_call.1} parent=31 // pred_check
          %p202 = pneg %p54
        $region34: #{tpu_custom_call.1} parent=31 // pred_check_branch
          %204 = sbr.rel (%p202) target = $region36
        $region35: #{tpu_custom_call.1} parent=31 // pred_region
          %205 = dma.done [#allocation4], 16
        $region36: #{tpu_custom_call.1} parent=31 // pred_fallthru
          _
        %s206 = sand.u32 %s69, 1
        %s207 = scalar_lea.sflag [#allocation7], %s206
        %s208 = sand.u32 %s69, 1
        %s209 = smul.addr %s208, 32
        %s210 = scalar_lea.vmem [#allocation6], %s209
        // Predicated region
        $region37: #{tpu_custom_call.1} parent=31 // pred_check
          %p211 = pneg %p82
        $region38: #{tpu_custom_call.1} parent=31 // pred_check_branch
          %213 = sbr.rel (%p211) target = $region40
        $region39: #{tpu_custom_call.1} parent=31 // pred_region
          %214 = dma.done %s207, 512
        $region40: #{tpu_custom_call.1} parent=31 // pred_fallthru
          _
        %p215 = pneg %p54
        %p216 = pneg %p51
        %s217 = sand.u32 %s69, 1
        %s218 = scalar_lea.sflag [#allocation7], %s217
        %s219 = sand.u32 %s69, 1
        %s220 = smul.addr %s219, 32
        %s221 = scalar_lea.vmem [#allocation6], %s220
        %p222 = pneg %p82
        %p223 = pneg %p79
        %p224 = scmp.lt.s32.totalorder %s25, 1
        %s225 = scalar_select %p224, %s25, 1
        %s226 = scalar_lea.vmem %s2, %s225
        %p227 = pneg %p108
        %p228 = pneg %p105
        %p229 = pneg %p134
        %p230 = pneg %p131
        %s231 = sand.u32 %s121, 1
        %s232 = scalar_lea.sflag [#allocation5], %s231
        %s233 = sand.u32 %s121, 1
        %s234 = scalar_lea.vmem [#allocation8], %s233
        %s235 = smul.u32 4, %s26
        %p236 = scmp.lt.s32.totalorder %s25, 1
        %s237 = scalar_select %p236, %s25, 1
        %s238 = scalar_lea.vmem %s2, %s237
        %p239 = scmp.eq.s32.totalorder %s26, 0
        // Predicated region
        $region41: #{tpu_custom_call.1} parent=31 // pred_check
          %p240 = pneg %p239
        $region42: #{tpu_custom_call.1} parent=31 // pred_check_branch
          %242 = sbr.rel (%p240) target = $region44
        $region43: #{tpu_custom_call.1} parent=31 // pred_region
          %243 = vst [vmem:[#allocation2] sm:$0x1] 0.0
        $region44: #{tpu_custom_call.1} parent=31 // pred_fallthru
          _
        %v244 = vld [vmem:[#allocation3] sm:$0x1]
        %v245 = vld [vmem:[%s210] sm:$0xff]
        %v246 = vld [vmem:[%s210 + $0x8] sm:$0xff]
        %v247 = vld [vmem:[%s210 + $0x10] sm:$0xff]
        %v248 = vld [vmem:[%s210 + $0x18] sm:$0xff]
        %v249 = vld [vmem:[#allocation2] sm:$0x1]
        %vm250 = vcmask 261120
        %v252 = vsel %vm250, %v244, 0
        %254 = vmatprep.subr.mxu0 0.0
        %255 = vmatpush1.msra.mxu0 %v245
        %256 = vmatprep.subr.mxu0 0.0
        %257 = vmatpush1.msra.mxu0 %v246
        %258 = vmatprep.subr.mxu0 0.0
        %259 = vmatpush1.msra.mxu0 %v247
        %260 = vmatprep.subr.mxu0 0.0
        %261 = vmatpush1.msra.mxu0 %v248
        %262 = vmatprep.subr.mxu0 0.0
        %263 = vmatpush1.msra.mxu0 0.0
        %264 = vmatprep.subr.mxu0 0.0
        %265 = vmatpush1.msra.mxu0 0.0
        %266 = vmatprep.subr.mxu0 0.0
        %267 = vmatpush1.msra.mxu0 0.0
        %268 = vmatprep.subr.mxu0 0.0
        %269 = vmatpush1.msra.mxu0 0.0
        %270 = vmatprep.subr.mxu0 0.0
        %271 = vmatpush1.msra.mxu0 0.0
        %272 = vmatprep.subr.mxu0 0.0
        %273 = vmatpush1.msra.mxu0 0.0
        %274 = vmatprep.subr.mxu0 0.0
        %275 = vmatpush1.msra.mxu0 0.0
        %276 = vmatprep.subr.mxu0 0.0
        %277 = vmatpush1.msra.mxu0 0.0
        %278 = vmatprep.subr.mxu0 0.0
        %279 = vmatpush1.msra.mxu0 0.0
        %280 = vmatprep.subr.mxu0 0.0
        %281 = vmatpush1.msra.mxu0 0.0
        %282 = vmatprep.subr.mxu0 0.0
        %283 = vmatpush1.msra.mxu0 0.0
        %284 = vmatprep.subr.mxu0 0.0
        %285 = vmatpush1.msra.mxu0 0.0
        %286 = vmatprep.subr.mxu0 0.0
        %287 = vmatpush1.msra.mxu0 0.0
        %288 = vmatprep.subr.mxu0 0.0
        %289 = vmatpush1.msra.mxu0 0.0
        %290 = vmatprep.subr.mxu0 0.0
        %291 = vmatpush1.msra.mxu0 0.0
        %292 = vmatprep.subr.mxu0 0.0
        %293 = vmatpush1.msra.mxu0 0.0
        %294 = vmatprep.subr.mxu0 0.0
        %295 = vmatpush1.msra.mxu0 0.0
        %296 = vmatprep.subr.mxu0 0.0
        %297 = vmatpush1.msra.mxu0 0.0
        %298 = vmatprep.subr.mxu0 0.0
        %299 = vmatpush1.msra.mxu0 0.0
        %300 = vmatprep.subr.mxu0 0.0
        %301 = vmatpush1.msra.mxu0 0.0
        %302 = vmatprep.subr.mxu0 0.0
        %303 = vmatpush1.msra.mxu0 0.0
        %304 = vmatprep.subr.mxu0 0.0
        %305 = vmatpush1.msra.mxu0 0.0
        %306 = vmatprep.subr.mxu0 0.0
        %307 = vmatpush1.msra.mxu0 0.0
        %308 = vmatprep.subr.mxu0 0.0
        %309 = vmatpush1.msra.mxu0 0.0
        %310 = vmatprep.subr.mxu0 0.0
        %311 = vmatpush1.msra.mxu0 0.0
        %312 = vmatprep.subr.mxu0 0.0
        %313 = vmatpush1.msra.mxu0 0.0
        %314 = vmatprep.subr.mxu0 0.0
        %315 = vmatpush1.msra.mxu0 0.0
        %316 = vmatprep.subr.mxu0 0.0
        %317 = vmatpush1.msra.mxu0 0.0
        %318 = vmatprep.mubr.f32.mxu0 0.0
        %319 = vmatmul.mubr.f32.gmra.mrb[0].mxu0 %v252
        %v320 = vpop.f32.mrb[0].mxu0
        %v321 = vadd.f32 0.0, %v320
        %v322 = vpop.f32.mrb[0].mxu0
        %323 = vdwg.mxu0
        %v324 = vadd.f32 %v249, %v321
        %325 = vst [vmem:[#allocation2] sm:$0x1] %v324
        // Predicated region
        $region45: #{tpu_custom_call.1} parent=31 // pred_check
          %p326 = pneg %p239
        $region46: #{tpu_custom_call.1} parent=31 // pred_check_branch
          %328 = sbr.rel (%p326) target = $region48
        $region47: #{tpu_custom_call.1} parent=31 // pred_region
          %v329 = vld [vmem:[#allocation2] sm:$0x1]
          %v330 = vld [vmem:[%s238] sm:$0x1]
          %v331 = vadd.f32 %v329, %v330
          %v332 = vmax.f32 %v331, 0.0
          %333 = vst [vmem:[%s234] sm:$0x1] %v332
        $region48: #{tpu_custom_call.1} parent=31 // pred_fallthru
          _
        %s334 = sand.u32 %s121, 1
        %s335 = scalar_lea.sflag [#allocation5], %s334
        %s336 = sand.u32 %s121, 1
        %s337 = scalar_lea.vmem [#allocation8], %s336
        // Predicated region
        $region49: #{tpu_custom_call.1} parent=31 // pred_check
          %p338 = pneg %p131
        $region50: #{tpu_custom_call.1} parent=31 // pred_check_branch
          %340 = sbr.rel (%p338) target = $region52
        $region51: #{tpu_custom_call.1} parent=31 // pred_region
          %s342 = ssub.s32 16, 16
          %343 = vsyncadd %s335, %s342
          %s344 = smul.addr %s25, 16
          %s345 = scalar_lea.hbm %s3, %s344
          %s347 = sshll.u32 %s337, 4
          %s348 = int_to_ptr.vmem [resolvable:$true] %s347
          %350 = dma.vmem_to_hbm [thread:$0]  %s348, 16, %s345, %s335
        $region52: #{tpu_custom_call.1} parent=31 // pred_fallthru
          _
      $region32: #{tpu_custom_call.1} parent=5 // pred_fallthru
        _
      %p351 = scmp.le.s32.totalorder 2, %s16
      // Predicated region
      $region53: #{tpu_custom_call.1} parent=5 // pred_check
        %p352 = pneg %p351
      $region54: #{tpu_custom_call.1} parent=5 // pred_check_branch
        %354 = sbr.rel (%p352) target = $region56
      $region55: #{tpu_custom_call.1} parent=5 // pred_region
        %s355 = ssub.s32 %s16, 2
        // Predicated region
        $region57: #{tpu_custom_call.1} parent=55 // pred_check
          %p356 = pneg %p137
        $region58: #{tpu_custom_call.1} parent=55 // pred_check_branch
          %358 = sbr.rel (%p356) target = $region60
        $region59: #{tpu_custom_call.1} parent=55 // pred_region
          %s359 = sand.u32 %s122, 1
          %s360 = scalar_lea.sflag [#allocation5], %s359
          %s361 = sand.u32 %s122, 1
          %s362 = scalar_lea.vmem [#allocation8], %s361
          %363 = dma.done %s360, 16
        $region60: #{tpu_custom_call.1} parent=55 // pred_fallthru
          _
      $region56: #{tpu_custom_call.1} parent=5 // pred_fallthru
        _
    $region6: #{tpu_custom_call.1} parent=1 // loop_footer
      %s20 = sadd.s32 1, %s16
    $region7: #{tpu_custom_call.1} parent=1 // loop_footer_branch
      %15 = sbr.rel target = $region3
    $region8: #{tpu_custom_call.1} parent=1 // loop_exit
      _
    %364 = vsyncpa [#allocation4], 1
    %s365 = scalar_lea.sflag [#allocation4], 1
    %366 = vsyncpa %s365, 1
    %367 = vsyncpa [#allocation7], 1
    %s368 = scalar_lea.sflag [#allocation7], 1
    %369 = vsyncpa %s368, 1
    %370 = vsyncpa [#allocation5], 1
    %s371 = scalar_lea.sflag [#allocation5], 1
    %372 = vsyncpa %s371, 1

</llo_original>
